<compile_context>
chip_gen: v6e
topology: v6e:2x2x1
jax: 0.10.0
libtpu: 0.0.40
codegen_flags: <defaults>
</compile_context>

<pallas_src>
import functools

import jax
import jax.numpy as jnp
from jax.experimental import pallas as pl
from jax.experimental.pallas import tpu as pltpu

# ----- model dims ---------------------------------------------------------------
IN_DIM = 4            # iris feature dimension
H1, H2, OUT = 50, 20, 3

# ----- padded feature-major layout constants -------------------------------------
IN_PAD = 8            # input features padded to one f32 sublane group
H1_PAD = 64           # hidden-1 padded (>=50, multiple of 8; half of the old 128)
H2_PAD = 32           # hidden-2 padded (>=20)
OUT_PAD = 8           # output rows padded to one sublane group (3 valid)
LANE = 128            # batch tile is a multiple of 128 (batch lives on lanes)

# Row offsets inside the packed parameter slab (one 2-D f32 array).
W1_OFF = 0                     # (H1_PAD, IN_PAD)  W1^T in cols [0, IN_PAD)
W2_OFF = W1_OFF + H1_PAD       # (H2_PAD, H1_PAD)  W2^T in cols [0, H1_PAD)
W3_OFF = W2_OFF + H2_PAD       # (OUT_PAD, H2_PAD) W3^T in cols [0, H2_PAD)
SLAB_ROWS = W3_OFF + OUT_PAD   # 104
BIAS_COL = H1_PAD              # col 64 holds b1 / b2 / b3 (in their own row ranges)
SLAB_COLS = 72                 # 64 weight cols + bias col, rounded to a multiple of 8


def _round_up(n, m):
    return ((n + m - 1) // m) * m


# ----- kernel --------------------------------------------------------------------
def mlp_kernel(x_ref, p_ref, o_ref):
    # x_ref: (IN_PAD, tb) f32  -- x^T, batch on lanes
    # p_ref: (SLAB_ROWS, SLAB_COLS) f32 -- resident weight slab (constant index_map)
    # o_ref: (OUT_PAD, tb)     -- out^T, batch on lanes (lane-dense store)
    xT = x_ref[...]

    w1t = p_ref[W1_OFF:W1_OFF + H1_PAD, 0:IN_PAD]        # (64, 8)
    w2t = p_ref[W2_OFF:W2_OFF + H2_PAD, 0:H1_PAD]        # (32, 64)
    w3t = p_ref[W3_OFF:W3_OFF + OUT_PAD, 0:H2_PAD]       # (8, 32)
    b1 = p_ref[W1_OFF:W1_OFF + H1_PAD, BIAS_COL:BIAS_COL + 1]   # (64, 1)
    b2 = p_ref[W2_OFF:W2_OFF + H2_PAD, BIAS_COL:BIAS_COL + 1]   # (32, 1)
    b3 = p_ref[W3_OFF:W3_OFF + OUT_PAD, BIAS_COL:BIAS_COL + 1]  # (8, 1)

    # Zero padding in x / weights / biases keeps all padded feature rows exactly
    # zero through the ReLUs, so rows [:3] of the output equal the unpadded MLP.
    h1 = jnp.maximum(jnp.dot(w1t, xT, preferred_element_type=jnp.float32) + b1, 0.0)
    h2 = jnp.maximum(jnp.dot(w2t, h1, preferred_element_type=jnp.float32) + b2, 0.0)
    o_ref[...] = (jnp.dot(w3t, h2, preferred_element_type=jnp.float32)
                  + b3).astype(o_ref.dtype)


# ----- parameter packing -----------------------------------------------------------
def pack_params(params):
    """Pack w1/b1/w2/b2/w3/b3 into one zero-padded (104, 72) f32 feature-major slab."""
    slab = jnp.zeros((SLAB_ROWS, SLAB_COLS), jnp.float32)
    # layer 1: W1^T (50, 4), b1 in the bias column
    slab = slab.at[W1_OFF:W1_OFF + H1, 0:IN_DIM].set(params["w1"].T.astype(jnp.float32))
    slab = slab.at[W1_OFF:W1_OFF + H1, BIAS_COL].set(params["b1"].reshape(-1).astype(jnp.float32))
    # layer 2: W2^T (20, 50)
    slab = slab.at[W2_OFF:W2_OFF + H2, 0:H1].set(params["w2"].T.astype(jnp.float32))
    slab = slab.at[W2_OFF:W2_OFF + H2, BIAS_COL].set(params["b2"].reshape(-1).astype(jnp.float32))
    # layer 3: W3^T (3, 20)
    slab = slab.at[W3_OFF:W3_OFF + OUT, 0:H2].set(params["w3"].T.astype(jnp.float32))
    slab = slab.at[W3_OFF:W3_OFF + OUT, BIAS_COL].set(params["b3"].reshape(-1).astype(jnp.float32))
    return slab


# ----- forward (feature-major core) -------------------------------------------------
def mlp_forward_t(xT_pad, slab, *, block_b=4096, out_dtype=jnp.float32,
                  core_parallel=False):
    """Hot-path entry: xT_pad is a pre-padded (IN_PAD, b_pad) f32 array (b_pad a
    multiple of 128 and of the batch tile).  Returns (OUT_PAD, b_pad); rows [:3]
    are the logits, batch on the lane axis."""
    _, b_pad = xT_pad.shape
    tb = min(_round_up(block_b, LANE), b_pad)
    assert b_pad % tb == 0
    # On v7x set core_parallel=True so the batch grid axis is actually split
    # across both TensorCores; plain "parallel" is safe everywhere.
    sem = (pltpu.CORE_PARALLEL,) if core_parallel else ("parallel",)
    return pl.pallas_call(
        mlp_kernel,
        out_shape=jax.ShapeDtypeStruct((OUT_PAD, b_pad), out_dtype),
        grid_spec=pltpu.PrefetchScalarGridSpec(
            num_scalar_prefetch=0,
            grid=(b_pad // tb,),
            in_specs=[
                pl.BlockSpec((IN_PAD, tb), lambda i: (0, i)),
                # Constant index_map -> slab stays resident in VMEM (single DMA).
                pl.BlockSpec((SLAB_ROWS, SLAB_COLS), lambda i: (0, 0)),
            ],
            out_specs=pl.BlockSpec((OUT_PAD, tb), lambda i: (0, i)),
        ),
        compiler_params=pltpu.CompilerParams(dimension_semantics=sem),
    )(xT_pad, slab)


# ----- convenience wrapper (module-equivalent (B,4) -> (B,3) API) -------------------
@functools.partial(jax.jit, static_argnames=("block_b", "out_dtype", "core_parallel"))
def mlp_forward(x, slab, block_b=4096, out_dtype=jnp.float32, core_parallel=False):
    """x: (B, IN_DIM); slab: packed params.  Returns (B, 3) logits."""
    B, D = x.shape
    assert D <= IN_PAD
    tb = min(_round_up(block_b, LANE), _round_up(B, LANE))   # batch tile (lane dim)
    b_pad = _round_up(B, tb)

    # Pad + transpose input to (IN_PAD, b_pad); padded rows/cols are zero.  This
    # wrapper pass only touches 8 rows (32 B/sample) instead of the old 512 B.
    xT = jnp.zeros((IN_PAD, b_pad), jnp.float32).at[:D, :B].set(
        x.astype(jnp.float32).T)

    out = mlp_forward_t(xT, slab, block_b=tb, out_dtype=out_dtype,
                        core_parallel=core_parallel)
    # Narrow (3, B) slice + transpose back to the module's (B, 3) layout.
    return out[:OUT, :B].T


# ----- init & reference --------------------------------------------------------------
def init_params(key, input_dim):
    """Deterministic init mimicking nn.Linear (uniform +/- 1/sqrt(fan_in))."""
    def linear(key, fan_in, fan_out):
        kw, kb = jax.random.split(key)
        bound = 1.0 / jnp.sqrt(fan_in)
        w = jax.random.uniform(kw, (fan_in, fan_out), jnp.float32, -bound, bound)
        b = jax.random.uniform(kb, (fan_out,), jnp.float32, -bound, bound)
        return w, b

    k1, k2, k3 = jax.random.split(key, 3)
    w1, b1 = linear(k1, input_dim, H1)
    w2, b2 = linear(k2, H1, H2)
    w3, b3 = linear(k3, H2, OUT)
    return {"w1": w1, "b1": b1, "w2": w2, "b2": b2, "w3": w3, "b3": b3}


def mlp_ref(x, p):
    h1 = jnp.maximum(x @ p["w1"] + p["b1"], 0.0)
    h2 = jnp.maximum(h1 @ p["w2"] + p["b2"], 0.0)
    return h2 @ p["w3"] + p["b3"]


if __name__ == "__main__":
    key = jax.random.PRNGKey(0)
    kx, kp = jax.random.split(key)

    params = init_params(kp, IN_DIM)
    slab = pack_params(params)

    # Small, module-consistent shapes.
    batch = 8
    x = jax.random.normal(kx, (batch, IN_DIM), jnp.float32)
    out = jax.block_until_ready(mlp_forward(x, slab))
    ref = mlp_ref(x, params)
    assert out.shape == (batch, OUT)
    assert jnp.allclose(out, ref, atol=1e-4, rtol=1e-4)

    # Second check: non-multiple batch with a small tile to exercise a multi-step
    # grid and the zero-padded batch columns.
    batch2 = 300
    x2 = jax.random.normal(jax.random.PRNGKey(1), (batch2, IN_DIM), jnp.float32)
    out2 = jax.block_until_ready(mlp_forward(x2, slab, block_b=128))
    ref2 = mlp_ref(x2, params)
    assert out2.shape == (batch2, OUT)
    assert jnp.allclose(out2, ref2, atol=1e-4, rtol=1e-4)

    print("KERNEL_OK")
</pallas_src>

<mosaic_0001>
module attributes {stable_mosaic.version = 11 : i64} {
  func.func @mlp_kernel(%arg0: i32, %arg1: memref<8x128xf32, #tpu.memory_space<vmem>>, %arg2: memref<104x72xf32, #tpu.memory_space<vmem>>, %arg3: memref<8x128xf32, #tpu.memory_space<vmem>>) attributes {dimension_semantics = [#tpu.dimension_semantics<parallel>], iteration_bounds = array<i64: 1>, scalar_prefetch = 0 : i64, scratch_operands = 0 : i64, tpu.core_type = #tpu.core_type<tc>, window_params = [{transform_indices = @transform_0, window_bounds = array<i64: 8, 128>}, {pipeline_mode = #tpu.pipeline_mode<synchronous>, transform_indices = @transform_1, window_bounds = array<i64: 104, 72>}, {transform_indices = @transform_2, window_bounds = array<i64: 8, 128>}]} {
    %c0 = arith.constant 0 : index
    %c0_0 = arith.constant 0 : index
    %0 = vector.load %arg1[%c0, %c0_0] : memref<8x128xf32, #tpu.memory_space<vmem>>, vector<8x128xf32>
    %c0_1 = arith.constant 0 : index
    %c0_2 = arith.constant 0 : index
    %1 = vector.load %arg2[%c0_1, %c0_2] : memref<104x72xf32, #tpu.memory_space<vmem>>, vector<64x8xf32>
    %c64 = arith.constant 64 : index
    %c0_3 = arith.constant 0 : index
    %2 = vector.load %arg2[%c64, %c0_3] : memref<104x72xf32, #tpu.memory_space<vmem>>, vector<32x64xf32>
    %c96 = arith.constant 96 : index
    %c0_4 = arith.constant 0 : index
    %3 = vector.load %arg2[%c96, %c0_4] : memref<104x72xf32, #tpu.memory_space<vmem>>, vector<8x32xf32>
    %c0_5 = arith.constant 0 : index
    %c64_6 = arith.constant 64 : index
    %4 = vector.load %arg2[%c0_5, %c64_6] : memref<104x72xf32, #tpu.memory_space<vmem>>, vector<64x1xf32>
    %c64_7 = arith.constant 64 : index
    %c64_8 = arith.constant 64 : index
    %5 = vector.load %arg2[%c64_7, %c64_8] : memref<104x72xf32, #tpu.memory_space<vmem>>, vector<32x1xf32>
    %c96_9 = arith.constant 96 : index
    %c64_10 = arith.constant 64 : index
    %6 = vector.load %arg2[%c96_9, %c64_10] : memref<104x72xf32, #tpu.memory_space<vmem>>, vector<8x1xf32>
    %cst = arith.constant dense<0.000000e+00> : vector<64x128xf32>
    %7 = tpu.matmul %1, %0, %cst {dimension_numbers = #tpu.dot_dimension_numbers<[1], [0], [0], [1], [0, 0, 1, 1], [], []>} : vector<64x8xf32>, vector<8x128xf32>, vector<64x128xf32> -> vector<64x128xf32>
    %8 = vector.broadcast %4 : vector<64x1xf32> to vector<64x128xf32>
    %9 = arith.addf %7, %8 : vector<64x128xf32>
    %cst_11 = arith.constant 0.000000e+00 : f32
    %10 = vector.broadcast %cst_11 : f32 to vector<64x128xf32>
    %11 = arith.maximumf %9, %10 : vector<64x128xf32>
    %cst_12 = arith.constant dense<0.000000e+00> : vector<32x128xf32>
    %12 = tpu.matmul %2, %11, %cst_12 {dimension_numbers = #tpu.dot_dimension_numbers<[1], [0], [0], [1], [0, 0, 1, 1], [], []>} : vector<32x64xf32>, vector<64x128xf32>, vector<32x128xf32> -> vector<32x128xf32>
    %13 = vector.broadcast %5 : vector<32x1xf32> to vector<32x128xf32>
    %14 = arith.addf %12, %13 : vector<32x128xf32>
    %cst_13 = arith.constant 0.000000e+00 : f32
    %15 = vector.broadcast %cst_13 : f32 to vector<32x128xf32>
    %16 = arith.maximumf %14, %15 : vector<32x128xf32>
    %cst_14 = arith.constant dense<0.000000e+00> : vector<8x128xf32>
    %17 = tpu.matmul %3, %16, %cst_14 {dimension_numbers = #tpu.dot_dimension_numbers<[1], [0], [0], [1], [0, 0, 1, 1], [], []>} : vector<8x32xf32>, vector<32x128xf32>, vector<8x128xf32> -> vector<8x128xf32>
    %18 = vector.broadcast %6 : vector<8x1xf32> to vector<8x128xf32>
    %19 = arith.addf %17, %18 : vector<8x128xf32>
    %c0_15 = arith.constant 0 : index
    %c0_16 = arith.constant 0 : index
    %20 = vector.load %arg3[%c0_15, %c0_16] : memref<8x128xf32, #tpu.memory_space<vmem>>, vector<8x128xf32>
    tpu.vector_store %arg3[%c0_15, %c0_16], %19 {strides = array<i32>} : memref<8x128xf32, #tpu.memory_space<vmem>>, vector<8x128xf32>,
    return
  }
  func.func @transform_0(%arg0: i32) -> (i32, i32) {
    %c0_i32 = arith.constant 0 : i32
    %c0_i32_0 = arith.constant 0 : i32
    return %c0_i32, %arg0 : i32, i32
  }
  func.func @transform_1(%arg0: i32) -> (i32, i32) {
    %c0_i32 = arith.constant 0 : i32
    %c0_i32_0 = arith.constant 0 : i32
    %c0_i32_1 = arith.constant 0 : i32
    return %c0_i32, %c0_i32_0 : i32, i32
  }
  func.func @transform_2(%arg0: i32) -> (i32, i32) {
    %c0_i32 = arith.constant 0 : i32
    %c0_i32_0 = arith.constant 0 : i32
    return %c0_i32, %arg0 : i32, i32
  }
}

</mosaic_0001>

<llo_original>
// kernel: mlp_forward.1
$region0: #{mlp_forward.1}
  #allocation0 [shape = 'u32[]', space=smem, size = 0x4, offset = 0x4, fixed_abs, tag = 'smem constant byte address 0x4 - core index']
  #allocation1 [shape = 'u32[144,128]{1,0:T(1,128)}', space=vmem, size = 0x12000, scoped, tag = 'internal scratch']
  %s0 = inlined_call_operand.vmem [shape: f32[8,128], index: 0, kind: input, shape index: {}]
  %s1 = inlined_call_operand.vmem [shape: f32[104,72], index: 1, kind: input, shape index: {}]
  %s2 = inlined_call_operand.vmem [shape: f32[8,128], index: 2, kind: output, shape index: {}]
  %s3 = sld [smem:[#allocation0]]
  $region18: #{mlp_forward.1} parent=0
    _
  %s5 = ssub.s32 1, %s3
  %s6 = scalar_select 0, %s5, %s3
  // Predicated region
  $region2: #{mlp_forward.1} parent=0 // pred_check
    _
  $region3: #{mlp_forward.1} parent=0 // pred_check_branch
    %8 = sbr.rel (0) target = $region5
  $region4: #{mlp_forward.1} parent=0 // pred_region
    _
  $region5: #{mlp_forward.1} parent=0 // pred_fallthru
    _
  // Predicated region
  $region6: #{mlp_forward.1} parent=0 // pred_check
    _
  $region7: #{mlp_forward.1} parent=0 // pred_check_branch
    %10 = sbr.rel (0) target = $region9
  $region8: #{mlp_forward.1} parent=0 // pred_region
    _
  $region9: #{mlp_forward.1} parent=0 // pred_fallthru
    _
  %v11 = vld [vmem:[%s0] sm:$0xff]
  %v12 = vld [vmem:[%s1] sm:$0xff]
  %v13 = vld [vmem:[%s1 + $0x8] sm:$0xff]
  %v14 = vld [vmem:[%s1 + $0x10] sm:$0xff]
  %v15 = vld [vmem:[%s1 + $0x18] sm:$0xff]
  %v16 = vld [vmem:[%s1 + $0x20] sm:$0xff]
  %v17 = vld [vmem:[%s1 + $0x28] sm:$0xff]
  %v18 = vld [vmem:[%s1 + $0x30] sm:$0xff]
  %v19 = vld [vmem:[%s1 + $0x38] sm:$0xff]
  %v20 = vld [vmem:[%s1 + $0x40] sm:$0xff]
  %v21 = vld [vmem:[%s1 + $0x48] sm:$0xff]
  %v22 = vld [vmem:[%s1 + $0x50] sm:$0xff]
  %v23 = vld [vmem:[%s1 + $0x58] sm:$0xff]
  %v24 = vld [vmem:[%s1 + $0x60] sm:$0xff]
  %26 = vset.pattern.permute.xlu0 64
  %27 = vperm.xlu0 %26, %v12
  %v28 = vpop.permute.xlu0 %27
  %31 = vset.pattern.permute.xlu0 64
  %32 = vperm.xlu0 %31, %v13
  %v33 = vpop.permute.xlu0 %32
  %36 = vset.pattern.permute.xlu0 64
  %37 = vperm.xlu0 %36, %v14
  %v38 = vpop.permute.xlu0 %37
  %41 = vset.pattern.permute.xlu0 64
  %42 = vperm.xlu0 %41, %v15
  %v43 = vpop.permute.xlu0 %42
  %46 = vset.pattern.permute.xlu0 64
  %47 = vperm.xlu0 %46, %v16
  %v48 = vpop.permute.xlu0 %47
  %51 = vset.pattern.permute.xlu0 64
  %52 = vperm.xlu0 %51, %v17
  %v53 = vpop.permute.xlu0 %52
  %56 = vset.pattern.permute.xlu0 64
  %57 = vperm.xlu0 %56, %v18
  %v58 = vpop.permute.xlu0 %57
  %61 = vset.pattern.permute.xlu0 64
  %62 = vperm.xlu0 %61, %v19
  %v63 = vpop.permute.xlu0 %62
  %vm65 = vcmask 64512
  %v66 = vsel %vm65, %v12, 0
  %v68 = vsel %vm65, %v13, 0
  %v70 = vsel %vm65, %v14, 0
  %v72 = vsel %vm65, %v15, 0
  %v74 = vsel %vm65, %v16, 0
  %v76 = vsel %vm65, %v17, 0
  %v78 = vsel %vm65, %v18, 0
  %v80 = vsel %vm65, %v19, 0
  %82 = vmatprep.subr.mxu0 0.0
  %83 = vmatpush1.msra.mxu0 0.0
  %84 = vmatprep.subr.mxu0 0.0
  %85 = vmatpush1.msra.mxu0 0.0
  %86 = vmatprep.subr.mxu0 0.0
  %87 = vmatpush1.msra.mxu0 0.0
  %88 = vmatprep.subr.mxu0 0.0
  %89 = vmatpush1.msra.mxu0 0.0
  %90 = vmatprep.subr.mxu0 0.0
  %91 = vmatpush1.msra.mxu0 0.0
  %92 = vmatprep.subr.mxu0 0.0
  %93 = vmatpush1.msra.mxu0 0.0
  %94 = vmatprep.subr.mxu0 0.0
  %95 = vmatpush1.msra.mxu0 0.0
  %96 = vmatprep.subr.mxu0 0.0
  %97 = vmatpush1.msra.mxu0 0.0
  %98 = vmatprep.subr.mxu0 0.0
  %99 = vmatpush1.msra.mxu0 0.0
  %100 = vmatprep.subr.mxu0 0.0
  %101 = vmatpush1.msra.mxu0 0.0
  %102 = vmatprep.subr.mxu0 0.0
  %103 = vmatpush1.msra.mxu0 0.0
  %104 = vmatprep.subr.mxu0 0.0
  %105 = vmatpush1.msra.mxu0 0.0
  %106 = vmatprep.subr.mxu0 0.0
  %107 = vmatpush1.msra.mxu0 0.0
  %108 = vmatprep.subr.mxu0 0.0
  %109 = vmatpush1.msra.mxu0 0.0
  %110 = vmatprep.subr.mxu0 0.0
  %111 = vmatpush1.msra.mxu0 0.0
  %112 = vmatprep.subr.mxu0 0.0
  %113 = vmatpush1.msra.mxu0 %v11
  %114 = vmatprep.subr.mxu0 0.0
  %115 = vmatpush2.msra.mxu0 0.0
  %116 = vmatprep.subr.mxu0 0.0
  %117 = vmatpush2.msra.mxu0 0.0
  %118 = vmatprep.subr.mxu0 0.0
  %119 = vmatpush2.msra.mxu0 0.0
  %120 = vmatprep.subr.mxu0 0.0
  %121 = vmatpush2.msra.mxu0 0.0
  %122 = vmatprep.subr.mxu0 0.0
  %123 = vmatpush2.msra.mxu0 0.0
  %124 = vmatprep.subr.mxu0 0.0
  %125 = vmatpush2.msra.mxu0 0.0
  %126 = vmatprep.subr.mxu0 0.0
  %127 = vmatpush2.msra.mxu0 0.0
  %128 = vmatprep.subr.mxu0 0.0
  %129 = vmatpush2.msra.mxu0 0.0
  %130 = vmatprep.subr.mxu0 0.0
  %131 = vmatpush2.msra.mxu0 0.0
  %132 = vmatprep.subr.mxu0 0.0
  %133 = vmatpush2.msra.mxu0 0.0
  %134 = vmatprep.subr.mxu0 0.0
  %135 = vmatpush2.msra.mxu0 0.0
  %136 = vmatprep.subr.mxu0 0.0
  %137 = vmatpush2.msra.mxu0 0.0
  %138 = vmatprep.subr.mxu0 0.0
  %139 = vmatpush2.msra.mxu0 0.0
  %140 = vmatprep.subr.mxu0 0.0
  %141 = vmatpush2.msra.mxu0 0.0
  %142 = vmatprep.subr.mxu0 0.0
  %143 = vmatpush2.msra.mxu0 0.0
  %144 = vmatprep.subr.mxu0 0.0
  %145 = vmatpush2.msra.mxu0 0.0
  %146 = vmatprep.mubr.f32.mxu0 0.0
  %147 = vmatmul.mubr.f32.gmra.mxu0 %v66
  %v148 = vpop.f32.mrf.mxu0
  %v149 = vadd.f32 %v28, %v148
  %v150 = vpop.f32.mrf.mxu0
  %151 = vmatprep.mubr.f32.mxu0 0.0
  %152 = vmatmul.mubr.f32.gmra.mxu0 %v68
  %v153 = vpop.f32.mrf.mxu0
  %v154 = vadd.f32 %v33, %v153
  %v155 = vpop.f32.mrf.mxu0
  %156 = vmatprep.mubr.f32.mxu0 0.0
  %157 = vmatmul.mubr.f32.gmra.mxu0 %v70
  %v158 = vpop.f32.mrf.mxu0
  %v159 = vadd.f32 %v38, %v158
  %v160 = vpop.f32.mrf.mxu0
  %161 = vmatprep.mubr.f32.mxu0 0.0
  %162 = vmatmul.mubr.f32.gmra.mxu0 %v72
  %v163 = vpop.f32.mrf.mxu0
  %v164 = vadd.f32 %v43, %v163
  %v165 = vpop.f32.mrf.mxu0
  %166 = vmatprep.mubr.f32.mxu0 0.0
  %167 = vmatmul.mubr.f32.gmra.mxu0 %v74
  %v168 = vpop.f32.mrf.mxu0
  %v169 = vadd.f32 %v48, %v168
  %v170 = vpop.f32.mrf.mxu0
  %171 = vmatprep.mubr.f32.mxu0 0.0
  %172 = vmatmul.mubr.f32.gmra.mxu0 %v76
  %v173 = vpop.f32.mrf.mxu0
  %v174 = vadd.f32 %v53, %v173
  %v175 = vpop.f32.mrf.mxu0
  %176 = vmatprep.mubr.f32.mxu0 0.0
  %177 = vmatmul.mubr.f32.gmra.mxu0 %v78
  %v178 = vpop.f32.mrf.mxu0
  %v179 = vadd.f32 %v58, %v178
  %v180 = vpop.f32.mrf.mxu0
  %181 = vmatprep.mubr.f32.mxu0 0.0
  %182 = vmatmul.mubr.f32.gmra.mxu0 %v80
  %v183 = vpop.f32.mrf.mxu0
  %v184 = vadd.f32 %v63, %v183
  %v185 = vpop.f32.mrf.mxu0
  %186 = vdwg.mxu0
  %v187 = vmax.f32 %v149, 0.0
  %v188 = vmax.f32 %v154, 0.0
  %v189 = vmax.f32 %v159, 0.0
  %v190 = vmax.f32 %v164, 0.0
  %v191 = vmax.f32 %v169, 0.0
  %v192 = vmax.f32 %v174, 0.0
  %v193 = vmax.f32 %v179, 0.0
  %v194 = vmax.f32 %v184, 0.0
  %196 = vset.pattern.permute.xlu0 64
  %197 = vperm.xlu0 %196, %v20
  %v198 = vpop.permute.xlu0 %197
  %201 = vset.pattern.permute.xlu0 64
  %202 = vperm.xlu0 %201, %v21
  %v203 = vpop.permute.xlu0 %202
  %206 = vset.pattern.permute.xlu0 64
  %207 = vperm.xlu0 %206, %v22
  %v208 = vpop.permute.xlu0 %207
  %211 = vset.pattern.permute.xlu0 64
  %212 = vperm.xlu0 %211, %v23
  %v213 = vpop.permute.xlu0 %212
  %vm215 = vcmask 523264
  %v216 = vsel %vm215, %v20, 0
  %v218 = vsel %vm215, %v21, 0
  %v220 = vsel %vm215, %v22, 0
  %v222 = vsel %vm215, %v23, 0
  %224 = vmatprep.subr.mxu0 0.0
  %225 = vmatpush1.msra.mxu0 0.0
  %226 = vmatprep.subr.mxu0 0.0
  %227 = vmatpush1.msra.mxu0 0.0
  %228 = vmatprep.subr.mxu0 0.0
  %229 = vmatpush1.msra.mxu0 0.0
  %230 = vmatprep.subr.mxu0 0.0
  %231 = vmatpush1.msra.mxu0 0.0
  %232 = vmatprep.subr.mxu0 0.0
  %233 = vmatpush1.msra.mxu0 0.0
  %234 = vmatprep.subr.mxu0 0.0
  %235 = vmatpush1.msra.mxu0 0.0
  %236 = vmatprep.subr.mxu0 0.0
  %237 = vmatpush1.msra.mxu0 0.0
  %238 = vmatprep.subr.mxu0 0.0
  %239 = vmatpush1.msra.mxu0 0.0
  %240 = vmatprep.subr.mxu0 0.0
  %241 = vmatpush1.msra.mxu0 %v194
  %242 = vmatprep.subr.mxu0 0.0
  %243 = vmatpush1.msra.mxu0 %v193
  %244 = vmatprep.subr.mxu0 0.0
  %245 = vmatpush1.msra.mxu0 %v192
  %246 = vmatprep.subr.mxu0 0.0
  %247 = vmatpush1.msra.mxu0 %v191
  %248 = vmatprep.subr.mxu0 0.0
  %249 = vmatpush1.msra.mxu0 %v190
  %250 = vmatprep.subr.mxu0 0.0
  %251 = vmatpush1.msra.mxu0 %v189
  %252 = vmatprep.subr.mxu0 0.0
  %253 = vmatpush1.msra.mxu0 %v188
  %254 = vmatprep.subr.mxu0 0.0
  %255 = vmatpush1.msra.mxu0 %v187
  %256 = vmatprep.subr.mxu0 0.0
  %257 = vmatpush2.msra.mxu0 0.0
  %258 = vmatprep.subr.mxu0 0.0
  %259 = vmatpush2.msra.mxu0 0.0
  %260 = vmatprep.subr.mxu0 0.0
  %261 = vmatpush2.msra.mxu0 0.0
  %262 = vmatprep.subr.mxu0 0.0
  %263 = vmatpush2.msra.mxu0 0.0
  %264 = vmatprep.subr.mxu0 0.0
  %265 = vmatpush2.msra.mxu0 0.0
  %266 = vmatprep.subr.mxu0 0.0
  %267 = vmatpush2.msra.mxu0 0.0
  %268 = vmatprep.subr.mxu0 0.0
  %269 = vmatpush2.msra.mxu0 0.0
  %270 = vmatprep.subr.mxu0 0.0
  %271 = vmatpush2.msra.mxu0 0.0
  %272 = vmatprep.subr.mxu0 0.0
  %273 = vmatpush2.msra.mxu0 0.0
  %274 = vmatprep.subr.mxu0 0.0
  %275 = vmatpush2.msra.mxu0 0.0
  %276 = vmatprep.subr.mxu0 0.0
  %277 = vmatpush2.msra.mxu0 0.0
  %278 = vmatprep.subr.mxu0 0.0
  %279 = vmatpush2.msra.mxu0 0.0
  %280 = vmatprep.subr.mxu0 0.0
  %281 = vmatpush2.msra.mxu0 0.0
  %282 = vmatprep.subr.mxu0 0.0
  %283 = vmatpush2.msra.mxu0 0.0
  %284 = vmatprep.subr.mxu0 0.0
  %285 = vmatpush2.msra.mxu0 0.0
  %286 = vmatprep.subr.mxu0 0.0
  %287 = vmatpush2.msra.mxu0 0.0
  %288 = vmatprep.mubr.f32.mxu0 0.0
  %289 = vmatmul.mubr.f32.gmra.mxu0 %v216
  %v290 = vpop.f32.mrf.mxu0
  %v291 = vadd.f32 %v198, %v290
  %v292 = vpop.f32.mrf.mxu0
  %293 = vmatprep.mubr.f32.mxu0 0.0
  %294 = vmatmul.mubr.f32.gmra.mxu0 %v218
  %v295 = vpop.f32.mrf.mxu0
  %v296 = vadd.f32 %v203, %v295
  %v297 = vpop.f32.mrf.mxu0
  %298 = vmatprep.mubr.f32.mxu0 0.0
  %299 = vmatmul.mubr.f32.gmra.mxu0 %v220
  %v300 = vpop.f32.mrf.mxu0
  %v301 = vadd.f32 %v208, %v300
  %v302 = vpop.f32.mrf.mxu0
  %303 = vmatprep.mubr.f32.mxu0 0.0
  %304 = vmatmul.mubr.f32.gmra.mxu0 %v222
  %v305 = vpop.f32.mrf.mxu0
  %v306 = vadd.f32 %v213, %v305
  %v307 = vpop.f32.mrf.mxu0
  %308 = vdwg.mxu0
  %v309 = vmax.f32 %v291, 0.0
  %v310 = vmax.f32 %v296, 0.0
  %v311 = vmax.f32 %v301, 0.0
  %v312 = vmax.f32 %v306, 0.0
  %314 = vset.pattern.permute.xlu0 64
  %315 = vperm.xlu0 %314, %v24
  %v316 = vpop.permute.xlu0 %315
  %vm318 = vcmask 261120
  %v319 = vsel %vm318, %v24, 0
  %321 = vmatprep.subr.mxu0 0.0
  %322 = vmatpush1.msra.mxu0 0.0
  %323 = vmatprep.subr.mxu0 0.0
  %324 = vmatpush1.msra.mxu0 0.0
  %325 = vmatprep.subr.mxu0 0.0
  %326 = vmatpush1.msra.mxu0 0.0
  %327 = vmatprep.subr.mxu0 0.0
  %328 = vmatpush1.msra.mxu0 0.0
  %329 = vmatprep.subr.mxu0 0.0
  %330 = vmatpush1.msra.mxu0 0.0
  %331 = vmatprep.subr.mxu0 0.0
  %332 = vmatpush1.msra.mxu0 0.0
  %333 = vmatprep.subr.mxu0 0.0
  %334 = vmatpush1.msra.mxu0 0.0
  %335 = vmatprep.subr.mxu0 0.0
  %336 = vmatpush1.msra.mxu0 0.0
  %337 = vmatprep.subr.mxu0 0.0
  %338 = vmatpush1.msra.mxu0 0.0
  %339 = vmatprep.subr.mxu0 0.0
  %340 = vmatpush1.msra.mxu0 0.0
  %341 = vmatprep.subr.mxu0 0.0
  %342 = vmatpush1.msra.mxu0 0.0
  %343 = vmatprep.subr.mxu0 0.0
  %344 = vmatpush1.msra.mxu0 0.0
  %345 = vmatprep.subr.mxu0 0.0
  %346 = vmatpush1.msra.mxu0 %v312
  %347 = vmatprep.subr.mxu0 0.0
  %348 = vmatpush1.msra.mxu0 %v311
  %349 = vmatprep.subr.mxu0 0.0
  %350 = vmatpush1.msra.mxu0 %v310
  %351 = vmatprep.subr.mxu0 0.0
  %352 = vmatpush1.msra.mxu0 %v309
  %353 = vmatprep.subr.mxu0 0.0
  %354 = vmatpush2.msra.mxu0 0.0
  %355 = vmatprep.subr.mxu0 0.0
  %356 = vmatpush2.msra.mxu0 0.0
  %357 = vmatprep.subr.mxu0 0.0
  %358 = vmatpush2.msra.mxu0 0.0
  %359 = vmatprep.subr.mxu0 0.0
  %360 = vmatpush2.msra.mxu0 0.0
  %361 = vmatprep.subr.mxu0 0.0
  %362 = vmatpush2.msra.mxu0 0.0
  %363 = vmatprep.subr.mxu0 0.0
  %364 = vmatpush2.msra.mxu0 0.0
  %365 = vmatprep.subr.mxu0 0.0
  %366 = vmatpush2.msra.mxu0 0.0
  %367 = vmatprep.subr.mxu0 0.0
  %368 = vmatpush2.msra.mxu0 0.0
  %369 = vmatprep.subr.mxu0 0.0
  %370 = vmatpush2.msra.mxu0 0.0
  %371 = vmatprep.subr.mxu0 0.0
  %372 = vmatpush2.msra.mxu0 0.0
  %373 = vmatprep.subr.mxu0 0.0
  %374 = vmatpush2.msra.mxu0 0.0
  %375 = vmatprep.subr.mxu0 0.0
  %376 = vmatpush2.msra.mxu0 0.0
  %377 = vmatprep.subr.mxu0 0.0
  %378 = vmatpush2.msra.mxu0 0.0
  %379 = vmatprep.subr.mxu0 0.0
  %380 = vmatpush2.msra.mxu0 0.0
  %381 = vmatprep.subr.mxu0 0.0
  %382 = vmatpush2.msra.mxu0 0.0
  %383 = vmatprep.subr.mxu0 0.0
  %384 = vmatpush2.msra.mxu0 0.0
  %385 = vmatprep.mubr.f32.mxu0 0.0
  %386 = vmatmul.mubr.f32.gmra.mxu0 %v319
  %v387 = vpop.f32.mrf.mxu0
  %v388 = vadd.f32 %v316, %v387
  %v389 = vpop.f32.mrf.mxu0
  %390 = vdwg.mxu0
  %391 = vst [vmem:[%s2] sm:$0xff] %v388
  // Predicated region
  $region10: #{mlp_forward.1} parent=0 // pred_check
    _
  $region11: #{mlp_forward.1} parent=0 // pred_check_branch
    %393 = sbr.rel (0) target = $region13
  $region12: #{mlp_forward.1} parent=0 // pred_region
    _
  $region13: #{mlp_forward.1} parent=0 // pred_fallthru
    _
  // Predicated region
  $region14: #{mlp_forward.1} parent=0 // pred_check
    _
  $region15: #{mlp_forward.1} parent=0 // pred_check_branch
    %395 = sbr.rel (0) target = $region17
  $region16: #{mlp_forward.1} parent=0 // pred_region
    _
  $region17: #{mlp_forward.1} parent=0 // pred_fallthru
    _

</llo_original>
